<compile_context>
chip_gen: v5e
topology: v5e:2x2
jax: 0.10.0
libtpu: 0.0.40
codegen_flags: <defaults>
</compile_context>

<pallas_src>
import functools

import jax
import jax.numpy as jnp
from jax.experimental import pallas as pl
from jax.experimental.pallas import tpu as pltpu


def path_memory_kernel(x_ref, w_ref, b_ref, mem_ref, o_ref, *, heads, head_dim):
    """One lane-tile step.

    x_ref   : [dim_in, p_tile]                  bf16 patches, (b h w) on lanes
    w_ref   : [heads*head_dim, dim_in]          bf16 per-head linear rows, head-major
    b_ref   : [heads*head_dim, 1]               f32 bias
    mem_ref : [heads*head_out, heads*head_dim]  bf16 block-diagonal memory^T
    o_ref   : [heads*head_out, p_tile]          f32 output (lane-dense)
    """
    # fused linear for all heads: one MXU call, f32 accumulation
    z = jnp.dot(w_ref[...], x_ref[...],
                preferred_element_type=jnp.float32) + b_ref[...]   # [heads*head_dim, p]

    # grouped segmented softmax (per head, over the head_dim sublane rows).
    # head_dim == 8 == f32 sublane tile -> the reshape is layout-preserving.
    p_tile = z.shape[-1]
    z3 = z.reshape(heads, head_dim, p_tile)
    z3 = z3 - jnp.max(z3, axis=1, keepdims=True)
    e = jnp.exp(z3)
    inv = pl.reciprocal(jnp.sum(e, axis=1, keepdims=True), approx=False)  # EUP slot
    s = (e * inv).reshape(heads * head_dim, p_tile)

    # block-diagonal memory^T applies every head in one MXU call.
    # TODO(synk): if heads*head_dim ever exceeds the MXU contraction width
    # (128 v5e / 256 v6e,v7x), switch to per-head dots on the segmented slices.
    o_ref[...] = jnp.dot(mem_ref[...], s.astype(jnp.bfloat16),
                         preferred_element_type=jnp.float32)


def _pick_p_tile(l_pad, dim_in, rows_out, budget_bytes=40 << 20, max_tile=2048):
    """Largest multiple-of-128 lane tile dividing l_pad that fits the VMEM budget
    and (when possible) leaves >=2 grid steps for v7x megacore sharding."""
    # double-buffered streamed bytes per lane column: bf16 x in + f32 out
    bytes_per_col = 2 * (dim_in * 2) + 2 * (rows_out * 4)
    cap = min(max_tile, l_pad)
    if l_pad >= 256:
        cap = min(cap, l_pad // 2)          # keep >=2 parallel steps when possible
    cap = max(128, cap - cap % 128)
    t = cap
    while t >= 128:
        if l_pad % t == 0 and t * bytes_per_col <= budget_bytes:
            return t
        t -= 128
    return 128


def path_memory_forward(x, W, bias, memory, path_size, n_heads, out_channels):
    """x: [B, C, H, W] (NCHW, like torch). Returns [B, out_channels, H, W] (f32)."""
    B, C, H, Wd = x.shape
    ps = path_size
    ph, pw = H // ps, Wd // ps
    P = ph * pw
    dim_in = ps * ps * C
    head_dim = memory.shape[1]
    head_out = memory.shape[2]
    rows_in = n_heads * head_dim
    rows_out = n_heads * head_out

    # 'b c (h p1) (w p2) -> (p1 p2 c) (b h w)' — features on sublanes,
    # batch*patches merged on lanes; bf16 halves the dominant streamed bytes.
    patches_T = (x.reshape(B, C, ph, ps, pw, ps)
                  .transpose(3, 5, 1, 0, 2, 4)
                  .reshape(dim_in, B * P)
                  .astype(jnp.bfloat16))

    # pad the lane axis up to a multiple of 128 so stores are lane-dense
    L = B * P
    L_pad = ((L + 127) // 128) * 128
    if L_pad != L:
        patches_T = jnp.pad(patches_T, ((0, 0), (0, L_pad - L)))

    # Linear output columns are '(c m)' with heads innermost.  Stack head-major:
    # W_fused[m*head_dim + c, :] == W[c*n_heads + m, :]
    W_fused = (W.reshape(head_dim, n_heads, dim_in)
                .transpose(1, 0, 2)
                .reshape(rows_in, dim_in)
                .astype(jnp.bfloat16))
    b_fused = bias.reshape(head_dim, n_heads).T.reshape(rows_in, 1).astype(jnp.float32)

    # Block-diagonal memory^T: block (m, m) = memory[m].T, zeros elsewhere.
    memT = memory.transpose(0, 2, 1)                               # [heads, head_out, head_dim]
    eye = jnp.eye(n_heads, dtype=memory.dtype)
    mem_bd = (memT[:, :, None, :] * eye[:, None, :, None]).reshape(
        rows_out, rows_in).astype(jnp.bfloat16)

    p_tile = _pick_p_tile(L_pad, dim_in, rows_out)
    grid = (L_pad // p_tile,)

    # explicit VMEM budget: streamed double-buffered blocks + resident params
    streamed = p_tile * (2 * dim_in * 2 + 2 * rows_out * 4)
    resident = 2 * (rows_in * dim_in * 2 + rows_in * 4 + rows_out * rows_in * 2)
    vmem_limit = int(min(max(2 * (streamed + resident) + (4 << 20), 16 << 20), 64 << 20))

    kernel = functools.partial(path_memory_kernel, heads=n_heads, head_dim=head_dim)

    out = pl.pallas_call(
        kernel,
        out_shape=jax.ShapeDtypeStruct((rows_out, L_pad), jnp.float32),
        grid=grid,
        in_specs=[
            pl.BlockSpec((dim_in, p_tile), lambda p: (0, p)),
            # parameters: constant block index -> DMA'd once, resident in VMEM
            pl.BlockSpec((rows_in, dim_in), lambda p: (0, 0)),
            pl.BlockSpec((rows_in, 1), lambda p: (0, 0)),
            pl.BlockSpec((rows_out, rows_in), lambda p: (0, 0)),
        ],
        out_specs=pl.BlockSpec((rows_out, p_tile), lambda p: (0, p)),
        compiler_params=pltpu.CompilerParams(
            dimension_semantics=("parallel",),
            vmem_limit_bytes=vmem_limit,
            # allow XLA to fuse the patch rearrange into the x operand read
            allow_input_fusion=[True, False, False, False],
        ),
    )(patches_T, W_fused, b_fused, mem_bd)

    out = out[:, :L]
    # rows '(m (p1 p2 c))', cols '(b h w)'  ->  'b (m c) (h p1) (w p2)'
    c_out = out_channels // n_heads
    o = out.reshape(n_heads, ps, ps, c_out, B, ph, pw)
    o = o.transpose(4, 0, 3, 5, 1, 6, 2)
    return o.reshape(B, n_heads * c_out, ph * ps, pw * ps)


def path_memory_reference(x, W, bias, memory, path_size, n_heads, out_channels):
    """Pure-JAX (f32) mirror of the torch forward, for validation."""
    B, C, H, Wd = x.shape
    ps = path_size
    ph, pw = H // ps, Wd // ps
    P = ph * pw
    dim_in = ps * ps * C
    head_dim = memory.shape[1]

    patches = x.reshape(B, C, ph, ps, pw, ps).transpose(0, 2, 4, 3, 5, 1).reshape(B, P, dim_in)
    z = patches @ W.T + bias                                      # [B, P, ps*ps*head_dim]
    z = z.reshape(B, P, head_dim, n_heads).transpose(0, 3, 2, 1)  # 'b p (c m) -> b m c p'
    s = jax.nn.softmax(z, axis=2)
    o = jnp.einsum('nki,bnkl->bnil', memory, s)                   # [B, heads, head_out, P]
    c_out = out_channels // n_heads
    o = o.reshape(B, n_heads, ps, ps, c_out, ph, pw).transpose(0, 1, 4, 5, 2, 6, 3)
    return o.reshape(B, n_heads * c_out, ph * ps, pw * ps)


if __name__ == "__main__":
    # module hyper-parameters (n_heads == path_size**2 is required by the einsum)
    path_size = 2
    in_channels = 4
    out_channels = 8
    head_dim = 8
    n_heads = 4
    B, H, Wd = 2, 16, 16

    dim_in = path_size * path_size * in_channels
    lin_out = path_size * path_size * head_dim
    head_out = path_size * path_size * out_channels // n_heads

    key = jax.random.PRNGKey(0)
    kx, kw, kb, km = jax.random.split(key, 4)

    x = jax.random.normal(kx, (B, in_channels, H, Wd), dtype=jnp.float32)
    # deterministic synthetic parameters (module __init__ shapes)
    W = (jax.random.uniform(kw, (lin_out, dim_in), dtype=jnp.float32) * 2.0 - 1.0) / jnp.sqrt(dim_in)
    bias = (jax.random.uniform(kb, (lin_out,), dtype=jnp.float32) * 2.0 - 1.0) / jnp.sqrt(dim_in)
    memory = jax.random.uniform(km, (n_heads, head_dim, head_out), dtype=jnp.float32) * 2.0 - 1.0

    out = path_memory_forward(x, W, bias, memory, path_size, n_heads, out_channels)
    out = jax.block_until_ready(out)

    ref = path_memory_reference(x, W, bias, memory, path_size, n_heads, out_channels)
    assert out.shape == (B, out_channels, H, Wd), out.shape
    # tolerance accounts for bf16 MXU operands (accumulation / softmax stay f32)
    err = float(jnp.max(jnp.abs(out - ref)))
    assert jnp.allclose(out, ref, atol=4e-2, rtol=4e-2), err
    print("KERNEL_OK")
</pallas_src>

<mosaic_0001>
module attributes {stable_mosaic.version = 11 : i64} {
  func.func @path_memory_kernel(%arg0: i32, %arg1: memref<16x128xbf16, #tpu.memory_space<vmem>>, %arg2: memref<32x16xbf16, #tpu.memory_space<vmem>>, %arg3: memref<32x1xf32, #tpu.memory_space<vmem>>, %arg4: memref<32x32xbf16, #tpu.memory_space<vmem>>, %arg5: memref<32x128xf32, #tpu.memory_space<vmem>>) attributes {dimension_semantics = [#tpu.dimension_semantics<parallel>], iteration_bounds = array<i64: 1>, scalar_prefetch = 0 : i64, scratch_operands = 0 : i64, tpu.core_type = #tpu.core_type<tc>, window_params = [{transform_indices = @transform_0, window_bounds = array<i64: 16, 128>}, {pipeline_mode = #tpu.pipeline_mode<synchronous>, transform_indices = @transform_1, window_bounds = array<i64: 32, 16>}, {pipeline_mode = #tpu.pipeline_mode<synchronous>, transform_indices = @transform_2, window_bounds = array<i64: 32, 1>}, {pipeline_mode = #tpu.pipeline_mode<synchronous>, transform_indices = @transform_3, window_bounds = array<i64: 32, 32>}, {transform_indices = @transform_4, window_bounds = array<i64: 32, 128>}]} {
    %c0 = arith.constant 0 : index
    %c0_0 = arith.constant 0 : index
    %0 = vector.load %arg2[%c0, %c0_0] : memref<32x16xbf16, #tpu.memory_space<vmem>>, vector<32x16xbf16>
    %c0_1 = arith.constant 0 : index
    %c0_2 = arith.constant 0 : index
    %1 = vector.load %arg1[%c0_1, %c0_2] : memref<16x128xbf16, #tpu.memory_space<vmem>>, vector<16x128xbf16>
    %cst = arith.constant dense<0.000000e+00> : vector<32x128xf32>
    %2 = tpu.matmul %0, %1, %cst {dimension_numbers = #tpu.dot_dimension_numbers<[1], [0], [0], [1], [0, 0, 1, 1], [], []>} : vector<32x16xbf16>, vector<16x128xbf16>, vector<32x128xf32> -> vector<32x128xf32>
    %c0_3 = arith.constant 0 : index
    %c0_4 = arith.constant 0 : index
    %3 = vector.load %arg3[%c0_3, %c0_4] : memref<32x1xf32, #tpu.memory_space<vmem>>, vector<32x1xf32>
    %4 = vector.broadcast %3 : vector<32x1xf32> to vector<32x128xf32>
    %5 = arith.addf %2, %4 : vector<32x128xf32>
    %6 = vector.shape_cast %5 : vector<32x128xf32> to vector<4x8x128xf32>
    %cst_5 = arith.constant dense<0xFF800000> : vector<4x128xf32>
    %7 = vector.multi_reduction <maximumf>, %6, %cst_5 [1] : vector<4x8x128xf32> to vector<4x128xf32>
    %8 = vector.shape_cast %7 : vector<4x128xf32> to vector<4x1x128xf32>
    %9 = vector.broadcast %8 : vector<4x1x128xf32> to vector<4x8x128xf32>
    %10 = arith.subf %6, %9 : vector<4x8x128xf32>
    %11 = math.exp %10 : vector<4x8x128xf32>
    %cst_6 = arith.constant dense<0.000000e+00> : vector<4x128xf32>
    %12 = vector.multi_reduction <add>, %11, %cst_6 [1] : vector<4x8x128xf32> to vector<4x128xf32>
    %13 = vector.shape_cast %12 : vector<4x128xf32> to vector<4x1x128xf32>
    %14 = tpu.reciprocal %13 : vector<4x1x128xf32> -> vector<4x1x128xf32>
    %15 = vector.broadcast %14 : vector<4x1x128xf32> to vector<4x8x128xf32>
    %16 = arith.mulf %11, %15 : vector<4x8x128xf32>
    %17 = vector.shape_cast %16 : vector<4x8x128xf32> to vector<32x128xf32>
    %c0_7 = arith.constant 0 : index
    %c0_8 = arith.constant 0 : index
    %18 = vector.load %arg4[%c0_7, %c0_8] : memref<32x32xbf16, #tpu.memory_space<vmem>>, vector<32x32xbf16>
    %19 = arith.truncf %17 : vector<32x128xf32> to vector<32x128xbf16>
    %cst_9 = arith.constant dense<0.000000e+00> : vector<32x128xf32>
    %20 = tpu.matmul %18, %19, %cst_9 {dimension_numbers = #tpu.dot_dimension_numbers<[1], [0], [0], [1], [0, 0, 1, 1], [], []>} : vector<32x32xbf16>, vector<32x128xbf16>, vector<32x128xf32> -> vector<32x128xf32>
    %c0_10 = arith.constant 0 : index
    %c0_11 = arith.constant 0 : index
    %21 = vector.load %arg5[%c0_10, %c0_11] : memref<32x128xf32, #tpu.memory_space<vmem>>, vector<32x128xf32>
    tpu.vector_store %arg5[%c0_10, %c0_11], %20 {strides = array<i32>} : memref<32x128xf32, #tpu.memory_space<vmem>>, vector<32x128xf32>,
    return
  }
  func.func @transform_0(%arg0: i32) -> (i32, i32) {
    %c0_i32 = arith.constant 0 : i32
    %c0_i32_0 = arith.constant 0 : i32
    return %c0_i32, %arg0 : i32, i32
  }
  func.func @transform_1(%arg0: i32) -> (i32, i32) {
    %c0_i32 = arith.constant 0 : i32
    %c0_i32_0 = arith.constant 0 : i32
    %c0_i32_1 = arith.constant 0 : i32
    return %c0_i32, %c0_i32_0 : i32, i32
  }
  func.func @transform_2(%arg0: i32) -> (i32, i32) {
    %c0_i32 = arith.constant 0 : i32
    %c0_i32_0 = arith.constant 0 : i32
    %c0_i32_1 = arith.constant 0 : i32
    return %c0_i32, %c0_i32_0 : i32, i32
  }
  func.func @transform_3(%arg0: i32) -> (i32, i32) {
    %c0_i32 = arith.constant 0 : i32
    %c0_i32_0 = arith.constant 0 : i32
    %c0_i32_1 = arith.constant 0 : i32
    return %c0_i32, %c0_i32_0 : i32, i32
  }
  func.func @transform_4(%arg0: i32) -> (i32, i32) {
    %c0_i32 = arith.constant 0 : i32
    %c0_i32_0 = arith.constant 0 : i32
    return %c0_i32, %arg0 : i32, i32
  }
}

</mosaic_0001>

<llo_original>
// kernel: tpu_custom_call.1
$region0: #{tpu_custom_call.1}
  #allocation0 [shape = 'u32[]', space=smem, size = 0x4, offset = 0x4, fixed_abs, tag = 'smem constant byte address 0x4 - core index']
  #allocation1 [shape = 'u32[72,128]{1,0:T(1,128)}', space=vmem, size = 0x9000, scoped, tag = 'internal scratch']
  %s0 = inlined_call_operand.vmem [shape: bf16[16,128], index: 0, kind: input, shape index: {}]
  %s1 = inlined_call_operand.vmem [shape: bf16[32,16], index: 1, kind: input, shape index: {}]
  %s2 = inlined_call_operand.vmem [shape: f32[32,1], index: 2, kind: input, shape index: {}]
  %s3 = inlined_call_operand.vmem [shape: bf16[32,32], index: 3, kind: input, shape index: {}]
  %s4 = inlined_call_operand.hbm [shape: f32[32,128], index: 4, kind: output, shape index: {}]
  %s5 = sld [smem:[#allocation0]]
  $region26: #{tpu_custom_call.1} parent=0
    _
  %s7 = ssub.s32 1, %s5
  %s8 = scalar_select 0, %s7, %s5
  $region1: #{tpu_custom_call.1} parent=0
    #allocation2 [shape = 'u8[16384]{0}', space=vmem, size = 0x4000, scoped, tag = 'output window, operand 0, single buffered']
    #allocation3 [shape = 's32[1]{0}', space=sflag, size = 0x4, scoped, tag = 'scoped memory for tpu_custom_call.1']
    %9 = vsyncpa [#allocation3], 0
    // Predicated region
    $region2: #{tpu_custom_call.1} parent=1 // pred_check
      _
    $region3: #{tpu_custom_call.1} parent=1 // pred_check_branch
      %11 = sbr.rel (0) target = $region5
    $region4: #{tpu_custom_call.1} parent=1 // pred_region
      _
    $region5: #{tpu_custom_call.1} parent=1 // pred_fallthru
      _
    // Predicated region
    $region6: #{tpu_custom_call.1} parent=1 // pred_check
      _
    $region7: #{tpu_custom_call.1} parent=1 // pred_check_branch
      %13 = sbr.rel (0) target = $region9
    $region8: #{tpu_custom_call.1} parent=1 // pred_region
      _
    $region9: #{tpu_custom_call.1} parent=1 // pred_fallthru
      _
    // Predicated region
    $region10: #{tpu_custom_call.1} parent=1 // pred_check
      _
    $region11: #{tpu_custom_call.1} parent=1 // pred_check_branch
      %15 = sbr.rel (0) target = $region13
    $region12: #{tpu_custom_call.1} parent=1 // pred_region
      _
    $region13: #{tpu_custom_call.1} parent=1 // pred_fallthru
      _
    // Predicated region
    $region14: #{tpu_custom_call.1} parent=1 // pred_check
      _
    $region15: #{tpu_custom_call.1} parent=1 // pred_check_branch
      %17 = sbr.rel (0) target = $region17
    $region16: #{tpu_custom_call.1} parent=1 // pred_region
      _
    $region17: #{tpu_custom_call.1} parent=1 // pred_fallthru
      _
    %v19 = vld [vmem:[%s1] sm:$0xf]
    %v20 = vld [vmem:[%s1 + $0x4] sm:$0xf]
    %v21 = vld [vmem:[%s1 + $0x8] sm:$0xf]
    %v22 = vld [vmem:[%s1 + $0xc] sm:$0xf]
    %v23 = vld [vmem:[%s0] sm:$0xf]
    %v24 = vld [vmem:[%s0 + $0x4] sm:$0xf]
    %v25 = vld [vmem:[%s2] sm:$0xff]
    %v26 = vld [vmem:[%s2 + $0x8] sm:$0xff]
    %v27 = vld [vmem:[%s2 + $0x10] sm:$0xff]
    %v28 = vld [vmem:[%s2 + $0x18] sm:$0xff]
    %30 = vset.pattern.permute.xlu0 0
    %31 = vperm.xlu0 %30, %v25
    %v32 = vpop.permute.xlu0 %31
    %35 = vset.pattern.permute.xlu0 0
    %36 = vperm.xlu0 %35, %v26
    %v37 = vpop.permute.xlu0 %36
    %40 = vset.pattern.permute.xlu0 0
    %41 = vperm.xlu0 %40, %v27
    %v42 = vpop.permute.xlu0 %41
    %45 = vset.pattern.permute.xlu0 0
    %46 = vperm.xlu0 %45, %v28
    %v47 = vpop.permute.xlu0 %46
    %v53 = vunpack.c.l.b16 %v19
    %v54 = vunpack.c.l.b16 %v20
    %v55 = vunpack.c.l.b16 %v21
    %v56 = vunpack.c.l.b16 %v22
    %v57 = vpack.c.b16 %v54, %v53
    %v58 = vpack.c.b16 %v56, %v55
    %v61 = vunpack.c.l.b16 %v23
    %v62 = vunpack.c.l.b16 %v24
    %v63 = vpack.c.b16 %v62, %v61
    %vm65 = vcmask 130048
    %v67 = vsel %vm65, %v57, 0
    %v70 = vsel %vm65, %v58, 0
    %72 = vmatpush.bf16.msra.mxu0 0
    %73 = vmatpush.bf16.msra.mxu0 0
    %74 = vmatpush.bf16.msra.mxu0 0
    %75 = vmatpush.bf16.msra.mxu0 0
    %76 = vmatpush.bf16.msra.mxu0 0
    %77 = vmatpush.bf16.msra.mxu0 0
    %78 = vmatpush.bf16.msra.mxu0 0
    %79 = vmatpush.bf16.msra.mxu0 %v63
    %80 = vmatmul.bf16.gmra.mxu0 %v67
    %v81 = vpop.f32.mrf.mxu0
    %v82 = vadd.f32 %v32, %v81
    %v83 = vpop.f32.mrf.mxu0
    %v84 = vadd.f32 %v37, %v83
    %85 = vmatmul.bf16.gmra.mxu0 %v70
    %v86 = vpop.f32.mrf.mxu0
    %v87 = vadd.f32 %v42, %v86
    %v88 = vpop.f32.mrf.mxu0
    %v89 = vadd.f32 %v47, %v88
    %90 = vdwg.mxu0
    %v91 = vrot.slane %v82, 4
    %v92 = vmax.f32 %v82, %v91
    %v93 = vrot.slane %v92, 2
    %v94 = vmax.f32 %v92, %v93
    %v95 = vrot.slane %v94, 1
    %v96 = vmax.f32 %v94, %v95
    %v97 = vrot.slane %v84, 4
    %v98 = vmax.f32 %v84, %v97
    %v99 = vrot.slane %v98, 2
    %v100 = vmax.f32 %v98, %v99
    %v101 = vrot.slane %v100, 1
    %v102 = vmax.f32 %v100, %v101
    %v103 = vrot.slane %v87, 4
    %v104 = vmax.f32 %v87, %v103
    %v105 = vrot.slane %v104, 2
    %v106 = vmax.f32 %v104, %v105
    %v107 = vrot.slane %v106, 1
    %v108 = vmax.f32 %v106, %v107
    %v109 = vrot.slane %v89, 4
    %v110 = vmax.f32 %v89, %v109
    %v111 = vrot.slane %v110, 2
    %v112 = vmax.f32 %v110, %v111
    %v113 = vrot.slane %v112, 1
    %v114 = vmax.f32 %v112, %v113
    %v115 = vsub.f32 %v82, %v96
    %v116 = vsub.f32 %v84, %v102
    %v117 = vsub.f32 %v87, %v108
    %v118 = vsub.f32 %v89, %v114
    %v119 = vmul.f32 %v115, 1.442695
    %v120 = vpow.pop %v119
    %v121 = vmul.f32 %v116, 1.442695
    %v122 = vpow.pop %v121
    %v123 = vmul.f32 %v117, 1.442695
    %v124 = vpow.pop %v123
    %v125 = vmul.f32 %v118, 1.442695
    %v126 = vpow.pop %v125
    %v127 = vrot.slane %v120, 4
    %v128 = vadd.f32 %v120, %v127
    %v129 = vrot.slane %v128, 2
    %v130 = vadd.f32 %v128, %v129
    %v131 = vrot.slane %v130, 1
    %v132 = vadd.f32 %v130, %v131
    %v133 = vrot.slane %v122, 4
    %v134 = vadd.f32 %v122, %v133
    %v135 = vrot.slane %v134, 2
    %v136 = vadd.f32 %v134, %v135
    %v137 = vrot.slane %v136, 1
    %v138 = vadd.f32 %v136, %v137
    %v139 = vrot.slane %v124, 4
    %v140 = vadd.f32 %v124, %v139
    %v141 = vrot.slane %v140, 2
    %v142 = vadd.f32 %v140, %v141
    %v143 = vrot.slane %v142, 1
    %v144 = vadd.f32 %v142, %v143
    %v145 = vrot.slane %v126, 4
    %v146 = vadd.f32 %v126, %v145
    %v147 = vrot.slane %v146, 2
    %v148 = vadd.f32 %v146, %v147
    %v149 = vrot.slane %v148, 1
    %v150 = vadd.f32 %v148, %v149
    %v151 = vrcp.pop %v132
    %v152 = vmul.f32 %v132, %v151
    %v153 = vsub.f32 1.0, %v152
    %v154 = vmul.f32 %v151, %v153
    %v155 = vadd.f32 %v151, %v154
    %vm156 = vweird.f32 %v132
    %vm157 = vweird.f32 %v151
    %vm158 = vmor %vm156, %vm157
    %v159 = vsel %vm158, %v151, %v155
    %v160 = vand.u32 2147483647, %v132
    %vm161 = vcmp.eq.f32.partialorder %v160, 8.507059e+37
    %v162 = vand.u32 %v132, 2147483648
    %v163 = vor.u32 1.1754944e-38, %v162
    %v164 = vsel %vm161, %v163, %v159
    %v165 = vrcp.pop %v138
    %v166 = vmul.f32 %v138, %v165
    %v167 = vsub.f32 1.0, %v166
    %v168 = vmul.f32 %v165, %v167
    %v169 = vadd.f32 %v165, %v168
    %vm170 = vweird.f32 %v138
    %vm171 = vweird.f32 %v165
    %vm172 = vmor %vm170, %vm171
    %v173 = vsel %vm172, %v165, %v169
    %v174 = vand.u32 2147483647, %v138
    %vm175 = vcmp.eq.f32.partialorder %v174, 8.507059e+37
    %v176 = vand.u32 %v138, 2147483648
    %v177 = vor.u32 1.1754944e-38, %v176
    %v178 = vsel %vm175, %v177, %v173
    %v179 = vrcp.pop %v144
    %v180 = vmul.f32 %v144, %v179
    %v181 = vsub.f32 1.0, %v180
    %v182 = vmul.f32 %v179, %v181
    %v183 = vadd.f32 %v179, %v182
    %vm184 = vweird.f32 %v144
    %vm185 = vweird.f32 %v179
    %vm186 = vmor %vm184, %vm185
    %v187 = vsel %vm186, %v179, %v183
    %v188 = vand.u32 2147483647, %v144
    %vm189 = vcmp.eq.f32.partialorder %v188, 8.507059e+37
    %v190 = vand.u32 %v144, 2147483648
    %v191 = vor.u32 1.1754944e-38, %v190
    %v192 = vsel %vm189, %v191, %v187
    %v193 = vrcp.pop %v150
    %v194 = vmul.f32 %v150, %v193
    %v195 = vsub.f32 1.0, %v194
    %v196 = vmul.f32 %v193, %v195
    %v197 = vadd.f32 %v193, %v196
    %vm198 = vweird.f32 %v150
    %vm199 = vweird.f32 %v193
    %vm200 = vmor %vm198, %vm199
    %v201 = vsel %vm200, %v193, %v197
    %v202 = vand.u32 2147483647, %v150
    %vm203 = vcmp.eq.f32.partialorder %v202, 8.507059e+37
    %v204 = vand.u32 %v150, 2147483648
    %v205 = vor.u32 1.1754944e-38, %v204
    %v206 = vsel %vm203, %v205, %v201
    %v207 = vmul.f32 %v120, %v164
    %v208 = vmul.f32 %v122, %v178
    %v209 = vmul.f32 %v124, %v192
    %v210 = vmul.f32 %v126, %v206
    %v211 = vld [vmem:[%s3] sm:$0xf]
    %v212 = vld [vmem:[%s3 + $0x4] sm:$0xf]
    %v213 = vld [vmem:[%s3 + $0x8] sm:$0xf]
    %v214 = vld [vmem:[%s3 + $0xc] sm:$0xf]
    %v215 = vpack.c.bf16 %v208, %v207
    %v216 = vpack.c.bf16 %v210, %v209
    %v221 = vunpack.c.l.b16 %v211
    %v222 = vunpack.c.l.b16 %v212
    %v223 = vunpack.c.l.b16 %v213
    %v224 = vunpack.c.l.b16 %v214
    %v225 = vpack.c.b16 %v222, %v221
    %v226 = vpack.c.b16 %v224, %v223
    %vm227 = vcmask 261120
    %v229 = vsel %vm227, %v225, 0
    %v232 = vsel %vm227, %v226, 0
    %234 = vmatpush.bf16.msra.mxu0 0
    %235 = vmatpush.bf16.msra.mxu0 0
    %236 = vmatpush.bf16.msra.mxu0 0
    %237 = vmatpush.bf16.msra.mxu0 0
    %238 = vmatpush.bf16.msra.mxu0 0
    %239 = vmatpush.bf16.msra.mxu0 0
    %240 = vmatpush.bf16.msra.mxu0 %v216
    %241 = vmatpush.bf16.msra.mxu0 %v215
    %242 = vmatmul.bf16.gmra.mxu0 %v229
    %v243 = vpop.f32.mrf.mxu0
    %v244 = vadd.f32 0.0, %v243
    %v245 = vpop.f32.mrf.mxu0
    %v246 = vadd.f32 0.0, %v245
    %247 = vmatmul.bf16.gmra.mxu0 %v232
    %v248 = vpop.f32.mrf.mxu0
    %v249 = vadd.f32 0.0, %v248
    %v250 = vpop.f32.mrf.mxu0
    %v251 = vadd.f32 0.0, %v250
    %252 = vdwg.mxu0
    %253 = vst [vmem:[#allocation2] sm:$0xff] %v244
    %254 = vst [vmem:[#allocation2 + $0x8] sm:$0xff] %v246
    %255 = vst [vmem:[#allocation2 + $0x10] sm:$0xff] %v249
    %256 = vst [vmem:[#allocation2 + $0x18] sm:$0xff] %v251
    // Predicated region
    $region18: #{tpu_custom_call.1} parent=1 // pred_check
      _
    $region19: #{tpu_custom_call.1} parent=1 // pred_check_branch
      %258 = sbr.rel (0) target = $region21
    $region20: #{tpu_custom_call.1} parent=1 // pred_region
      %260 = vsyncadd [#allocation3], 0
      %s261 = sshll.u32 [#allocation2], 4
      %s262 = int_to_ptr.vmem [resolvable:$true] %s261
      %s263 = sshll.u32 %s4, 4
      %s264 = int_to_ptr.hbm [resolvable:$true] %s263
      %269 = dma.vmem_to_hbm [thread:$0]  %s262, 512, %s264, [#allocation3], 128, 128, 8
    $region21: #{tpu_custom_call.1} parent=1 // pred_fallthru
      _
    // Predicated region
    $region22: #{tpu_custom_call.1} parent=1 // pred_check
      _
    $region23: #{tpu_custom_call.1} parent=1 // pred_check_branch
      %271 = sbr.rel (0) target = $region25
    $region24: #{tpu_custom_call.1} parent=1 // pred_region
      %273 = dma.done [#allocation3], 512
    $region25: #{tpu_custom_call.1} parent=1 // pred_fallthru
      _
    %274 = vsyncpa [#allocation3], 1

</llo_original>
